<compile_context>
chip_gen: v7x
topology: tpu7x:2x2x1
jax: 0.10.0
libtpu: 0.0.40
codegen_flags: <defaults>
</compile_context>

<pallas_src>
import jax
import jax.numpy as jnp
from jax.experimental import pallas as pl
from jax.experimental.pallas import tpu as pltpu


def conv1x1_kernel(x_ref, w_ref, b_ref, o_ref):
    # x_ref: VMEM (Nb, C_in, ...spatial)   -- one multi-image tile
    # w_ref: SMEM (C_out*C_in,)            -- flattened, scalar reads
    # b_ref: SMEM (C_out,)                 -- scalar reads
    # o_ref: VMEM (Nb, C_out, ...spatial)
    c_in = x_ref.shape[1]
    c_out = o_ref.shape[1]

    # One coalesced tile load.
    x = x_ref[...].astype(jnp.float32)

    # C_out * C_in VPU scalar-broadcast FMAs, unrolled at trace time.
    outs = []
    for o in range(c_out):
        acc = x[:, 0] * w_ref[o * c_in + 0]
        for c in range(1, c_in):
            acc = acc + x[:, c] * w_ref[o * c_in + c]
        outs.append(acc + b_ref[o])

    # Full (Nb, C_out, ...) result, ONE coalesced tile store.
    y = jnp.stack(outs, axis=1)
    o_ref[...] = y.astype(o_ref.dtype)
    # TODO(synk): downstream elementwise ops (activation / residual) could be
    # fused here for free, but SimpleCNN.forward has none.


def _largest_divisor_le(n, cap):
    cap = max(1, min(n, cap))
    for d in range(cap, 0, -1):
        if n % d == 0:
            return d
    return 1


def _prod(t):
    r = 1
    for v in t:
        r *= int(v)
    return r


def conv1x1(x_nchw, weight, bias, *, target_block_bytes=512 * 1024):
    """1x1 conv, stride 1 (== SimpleCNN.forward).

    x_nchw: (N, C_in, H, W)
    weight: (C_out, C_in) or (C_out, C_in, 1, 1) (PyTorch Conv2d weight)
    bias:   (C_out,)
    returns (N, C_out, H, W)
    """
    N, C_in, H, W = x_nchw.shape
    if weight.ndim == 4:
        weight = weight.reshape(weight.shape[0], weight.shape[1])
    C_out = weight.shape[0]
    HW = H * W
    itemsize = jnp.dtype(x_nchw.dtype).itemsize

    # SMEM operands are 32-bit: keep params f32 regardless of model dtype.
    w_flat = weight.reshape(-1).astype(jnp.float32)   # row-major: [o*C_in + c]
    b_vec = bias.reshape(-1).astype(jnp.float32)

    per_image_in_bytes = C_in * HW * itemsize
    lane_dense = (HW % 128 == 0)

    if lane_dense:
        # (N, C_in, H*W) -> (N, C_in, S, 128): contiguous view, sublane-dense
        # channel planes when S >= 8 (free reshape, no HBM round trip).
        S = HW // 128
        x_r = x_nchw.reshape(N, C_in, S, 128)

        if per_image_in_bytes > target_block_bytes and S % 8 == 0 and S > 8:
            # Large feature map: one image per block, tile the spatial axis
            # in multiples of 8 sublane rows.
            Nb = 1
            st_cap_units = max(1, target_block_bytes // (C_in * 128 * itemsize * 8))
            St = _largest_divisor_le(S // 8, st_cap_units) * 8
        else:
            # Small/medium image: full spatial extent, pack images per block.
            St = S
            nb_cap = max(1, target_block_bytes // max(per_image_in_bytes, 1))
            Nb = _largest_divisor_le(N, nb_cap)

        grid = (N // Nb, S // St)
        in_block = (Nb, C_in, St, 128)
        out_block = (Nb, C_out, St, 128)
        in_map = lambda i, j: (i, 0, j, 0)
        out_map = lambda i, j: (i, 0, j, 0)
        out_struct = jax.ShapeDtypeStruct((N, C_out, S, 128), x_nchw.dtype)
    else:
        # Fallback: HW not a multiple of 128 -> keep full spatial axis per
        # block (block dims equal to full array dims satisfy the layout rule)
        # and block over batch only.
        x_r = x_nchw.reshape(N, C_in, HW)
        nb_cap = max(1, target_block_bytes // max(per_image_in_bytes, 1))
        Nb = _largest_divisor_le(N, nb_cap)
        grid = (N // Nb, 1)
        in_block = (Nb, C_in, HW)
        out_block = (Nb, C_out, HW)
        in_map = lambda i, j: (i, 0, 0)
        out_map = lambda i, j: (i, 0, 0)
        out_struct = jax.ShapeDtypeStruct((N, C_out, HW), x_nchw.dtype)

    in_block_bytes = _prod(in_block) * itemsize
    out_block_bytes = _prod(out_block) * itemsize

    # Raise the scoped-VMEM limit only if the double-buffered working set
    # (plus f32 compute temporaries) could overflow the smallest default
    # (v5e: 16 MiB). Kept under v7x's 64 MiB physical.
    vmem_need = 4 * (in_block_bytes + out_block_bytes) + (4 << 20)
    vmem_limit = min(vmem_need, 64 << 20) if vmem_need > (16 << 20) else None

    # Megacore split only when there is enough per-block work to amortize it.
    min_parallel_bytes = 256 * 1024
    sems = tuple(
        "parallel" if (g > 1 and in_block_bytes >= min_parallel_bytes) else "arbitrary"
        for g in grid
    )

    cost = pl.CostEstimate(
        flops=2 * N * C_out * C_in * HW + N * C_out * HW,
        transcendentals=0,
        bytes_accessed=(N * C_in * HW * itemsize) + (N * C_out * HW * itemsize)
        + w_flat.size * 4 + b_vec.size * 4,
    )

    out = pl.pallas_call(
        conv1x1_kernel,
        out_shape=out_struct,
        grid_spec=pltpu.PrefetchScalarGridSpec(
            num_scalar_prefetch=0,
            grid=grid,
            in_specs=[
                pl.BlockSpec(in_block, in_map),
                # Tiny weight/bias as SMEM operands: scalar reads, no VMEM
                # lane padding, no extra pipelined DMA streams.
                pl.BlockSpec(memory_space=pltpu.MemorySpace.SMEM),
                pl.BlockSpec(memory_space=pltpu.MemorySpace.SMEM),
            ],
            out_specs=pl.BlockSpec(out_block, out_map),
        ),
        compiler_params=pltpu.CompilerParams(
            dimension_semantics=sems,
            vmem_limit_bytes=vmem_limit,
        ),
        cost_estimate=cost,
    )(x_r, w_flat, b_vec)

    # Back to NCHW: contiguous view, free.
    return out.reshape(N, C_out, H, W)


if __name__ == "__main__":
    inch, outch = 4, 4
    N, H, W = 2, 16, 16

    key = jax.random.PRNGKey(0)
    kx, kw, kb = jax.random.split(key, 3)

    # Deterministic parameter init (shapes from Conv2d(4, 4, kernel_size=1)).
    bound = 1.0 / (inch ** 0.5)
    weight = jax.random.uniform(kw, (outch, inch), jnp.float32, -bound, bound)
    bias = jax.random.uniform(kb, (outch,), jnp.float32, -bound, bound)

    x = jax.random.normal(kx, (N, inch, H, W), jnp.float32)

    y = conv1x1(x, weight, bias)
    jax.block_until_ready(y)

    # Reference check against plain JAX (einsum over channels).
    y_ref = jnp.einsum("nchw,oc->nohw", x, weight) + bias[None, :, None, None]
    assert y.shape == (N, outch, H, W)
    assert jnp.allclose(y, y_ref, atol=1e-5, rtol=1e-5)

    print("KERNEL_OK")
</pallas_src>

<mosaic_0001>
module attributes {stable_mosaic.version = 11 : i64} {
  func.func @conv1x1_kernel(%arg0: i32, %arg1: i32, %arg2: memref<2x4x2x128xf32, #tpu.memory_space<vmem>>, %arg3: memref<16xf32, #tpu.memory_space<smem>>, %arg4: memref<4xf32, #tpu.memory_space<smem>>, %arg5: memref<2x4x2x128xf32, #tpu.memory_space<vmem>>) attributes {dimension_semantics = [#tpu.dimension_semantics<arbitrary>, #tpu.dimension_semantics<arbitrary>], iteration_bounds = array<i64: 1, 1>, scalar_prefetch = 0 : i64, scratch_operands = 0 : i64, tpu.core_type = #tpu.core_type<tc>, window_params = [{transform_indices = @transform_0, window_bounds = array<i64: 2, 4, 2, 128>}, {transform_indices = @transform_1, window_bounds = array<i64: 16>}, {transform_indices = @transform_2, window_bounds = array<i64: 4>}, {transform_indices = @transform_3, window_bounds = array<i64: 2, 4, 2, 128>}]} {
    %c0 = arith.constant 0 : index
    %c0_0 = arith.constant 0 : index
    %c0_1 = arith.constant 0 : index
    %c0_2 = arith.constant 0 : index
    %0 = vector.load %arg2[%c0, %c0_0, %c0_1, %c0_2] : memref<2x4x2x128xf32, #tpu.memory_space<vmem>>, vector<2x4x2x128xf32>
    %1 = vector.extract_strided_slice %0 {offsets = [0, 0, 0, 0], sizes = [2, 1, 2, 128], strides = [1, 1, 1, 1]} : vector<2x4x2x128xf32> to vector<2x1x2x128xf32>
    %2 = vector.shape_cast %1 : vector<2x1x2x128xf32> to vector<2x2x128xf32>
    %c0_3 = arith.constant 0 : index
    %3 = memref.load %arg3[%c0_3] : memref<16xf32, #tpu.memory_space<smem>>
    %4 = vector.broadcast %3 : f32 to vector<2x2x128xf32>
    %5 = arith.mulf %2, %4 : vector<2x2x128xf32>
    %6 = vector.extract_strided_slice %0 {offsets = [0, 1, 0, 0], sizes = [2, 1, 2, 128], strides = [1, 1, 1, 1]} : vector<2x4x2x128xf32> to vector<2x1x2x128xf32>
    %7 = vector.shape_cast %6 : vector<2x1x2x128xf32> to vector<2x2x128xf32>
    %c1 = arith.constant 1 : index
    %8 = memref.load %arg3[%c1] : memref<16xf32, #tpu.memory_space<smem>>
    %9 = vector.broadcast %8 : f32 to vector<2x2x128xf32>
    %10 = arith.mulf %7, %9 : vector<2x2x128xf32>
    %11 = arith.addf %5, %10 : vector<2x2x128xf32>
    %12 = vector.extract_strided_slice %0 {offsets = [0, 2, 0, 0], sizes = [2, 1, 2, 128], strides = [1, 1, 1, 1]} : vector<2x4x2x128xf32> to vector<2x1x2x128xf32>
    %13 = vector.shape_cast %12 : vector<2x1x2x128xf32> to vector<2x2x128xf32>
    %c2 = arith.constant 2 : index
    %14 = memref.load %arg3[%c2] : memref<16xf32, #tpu.memory_space<smem>>
    %15 = vector.broadcast %14 : f32 to vector<2x2x128xf32>
    %16 = arith.mulf %13, %15 : vector<2x2x128xf32>
    %17 = arith.addf %11, %16 : vector<2x2x128xf32>
    %18 = vector.extract_strided_slice %0 {offsets = [0, 3, 0, 0], sizes = [2, 1, 2, 128], strides = [1, 1, 1, 1]} : vector<2x4x2x128xf32> to vector<2x1x2x128xf32>
    %19 = vector.shape_cast %18 : vector<2x1x2x128xf32> to vector<2x2x128xf32>
    %c3 = arith.constant 3 : index
    %20 = memref.load %arg3[%c3] : memref<16xf32, #tpu.memory_space<smem>>
    %21 = vector.broadcast %20 : f32 to vector<2x2x128xf32>
    %22 = arith.mulf %19, %21 : vector<2x2x128xf32>
    %23 = arith.addf %17, %22 : vector<2x2x128xf32>
    %c0_4 = arith.constant 0 : index
    %24 = memref.load %arg4[%c0_4] : memref<4xf32, #tpu.memory_space<smem>>
    %25 = vector.broadcast %24 : f32 to vector<2x2x128xf32>
    %26 = arith.addf %23, %25 : vector<2x2x128xf32>
    %27 = vector.extract_strided_slice %0 {offsets = [0, 0, 0, 0], sizes = [2, 1, 2, 128], strides = [1, 1, 1, 1]} : vector<2x4x2x128xf32> to vector<2x1x2x128xf32>
    %28 = vector.shape_cast %27 : vector<2x1x2x128xf32> to vector<2x2x128xf32>
    %c4 = arith.constant 4 : index
    %29 = memref.load %arg3[%c4] : memref<16xf32, #tpu.memory_space<smem>>
    %30 = vector.broadcast %29 : f32 to vector<2x2x128xf32>
    %31 = arith.mulf %28, %30 : vector<2x2x128xf32>
    %32 = vector.extract_strided_slice %0 {offsets = [0, 1, 0, 0], sizes = [2, 1, 2, 128], strides = [1, 1, 1, 1]} : vector<2x4x2x128xf32> to vector<2x1x2x128xf32>
    %33 = vector.shape_cast %32 : vector<2x1x2x128xf32> to vector<2x2x128xf32>
    %c5 = arith.constant 5 : index
    %34 = memref.load %arg3[%c5] : memref<16xf32, #tpu.memory_space<smem>>
    %35 = vector.broadcast %34 : f32 to vector<2x2x128xf32>
    %36 = arith.mulf %33, %35 : vector<2x2x128xf32>
    %37 = arith.addf %31, %36 : vector<2x2x128xf32>
    %38 = vector.extract_strided_slice %0 {offsets = [0, 2, 0, 0], sizes = [2, 1, 2, 128], strides = [1, 1, 1, 1]} : vector<2x4x2x128xf32> to vector<2x1x2x128xf32>
    %39 = vector.shape_cast %38 : vector<2x1x2x128xf32> to vector<2x2x128xf32>
    %c6 = arith.constant 6 : index
    %40 = memref.load %arg3[%c6] : memref<16xf32, #tpu.memory_space<smem>>
    %41 = vector.broadcast %40 : f32 to vector<2x2x128xf32>
    %42 = arith.mulf %39, %41 : vector<2x2x128xf32>
    %43 = arith.addf %37, %42 : vector<2x2x128xf32>
    %44 = vector.extract_strided_slice %0 {offsets = [0, 3, 0, 0], sizes = [2, 1, 2, 128], strides = [1, 1, 1, 1]} : vector<2x4x2x128xf32> to vector<2x1x2x128xf32>
    %45 = vector.shape_cast %44 : vector<2x1x2x128xf32> to vector<2x2x128xf32>
    %c7 = arith.constant 7 : index
    %46 = memref.load %arg3[%c7] : memref<16xf32, #tpu.memory_space<smem>>
    %47 = vector.broadcast %46 : f32 to vector<2x2x128xf32>
    %48 = arith.mulf %45, %47 : vector<2x2x128xf32>
    %49 = arith.addf %43, %48 : vector<2x2x128xf32>
    %c1_5 = arith.constant 1 : index
    %50 = memref.load %arg4[%c1_5] : memref<4xf32, #tpu.memory_space<smem>>
    %51 = vector.broadcast %50 : f32 to vector<2x2x128xf32>
    %52 = arith.addf %49, %51 : vector<2x2x128xf32>
    %53 = vector.extract_strided_slice %0 {offsets = [0, 0, 0, 0], sizes = [2, 1, 2, 128], strides = [1, 1, 1, 1]} : vector<2x4x2x128xf32> to vector<2x1x2x128xf32>
    %54 = vector.shape_cast %53 : vector<2x1x2x128xf32> to vector<2x2x128xf32>
    %c8 = arith.constant 8 : index
    %55 = memref.load %arg3[%c8] : memref<16xf32, #tpu.memory_space<smem>>
    %56 = vector.broadcast %55 : f32 to vector<2x2x128xf32>
    %57 = arith.mulf %54, %56 : vector<2x2x128xf32>
    %58 = vector.extract_strided_slice %0 {offsets = [0, 1, 0, 0], sizes = [2, 1, 2, 128], strides = [1, 1, 1, 1]} : vector<2x4x2x128xf32> to vector<2x1x2x128xf32>
    %59 = vector.shape_cast %58 : vector<2x1x2x128xf32> to vector<2x2x128xf32>
    %c9 = arith.constant 9 : index
    %60 = memref.load %arg3[%c9] : memref<16xf32, #tpu.memory_space<smem>>
    %61 = vector.broadcast %60 : f32 to vector<2x2x128xf32>
    %62 = arith.mulf %59, %61 : vector<2x2x128xf32>
    %63 = arith.addf %57, %62 : vector<2x2x128xf32>
    %64 = vector.extract_strided_slice %0 {offsets = [0, 2, 0, 0], sizes = [2, 1, 2, 128], strides = [1, 1, 1, 1]} : vector<2x4x2x128xf32> to vector<2x1x2x128xf32>
    %65 = vector.shape_cast %64 : vector<2x1x2x128xf32> to vector<2x2x128xf32>
    %c10 = arith.constant 10 : index
    %66 = memref.load %arg3[%c10] : memref<16xf32, #tpu.memory_space<smem>>
    %67 = vector.broadcast %66 : f32 to vector<2x2x128xf32>
    %68 = arith.mulf %65, %67 : vector<2x2x128xf32>
    %69 = arith.addf %63, %68 : vector<2x2x128xf32>
    %70 = vector.extract_strided_slice %0 {offsets = [0, 3, 0, 0], sizes = [2, 1, 2, 128], strides = [1, 1, 1, 1]} : vector<2x4x2x128xf32> to vector<2x1x2x128xf32>
    %71 = vector.shape_cast %70 : vector<2x1x2x128xf32> to vector<2x2x128xf32>
    %c11 = arith.constant 11 : index
    %72 = memref.load %arg3[%c11] : memref<16xf32, #tpu.memory_space<smem>>
    %73 = vector.broadcast %72 : f32 to vector<2x2x128xf32>
    %74 = arith.mulf %71, %73 : vector<2x2x128xf32>
    %75 = arith.addf %69, %74 : vector<2x2x128xf32>
    %c2_6 = arith.constant 2 : index
    %76 = memref.load %arg4[%c2_6] : memref<4xf32, #tpu.memory_space<smem>>
    %77 = vector.broadcast %76 : f32 to vector<2x2x128xf32>
    %78 = arith.addf %75, %77 : vector<2x2x128xf32>
    %79 = vector.extract_strided_slice %0 {offsets = [0, 0, 0, 0], sizes = [2, 1, 2, 128], strides = [1, 1, 1, 1]} : vector<2x4x2x128xf32> to vector<2x1x2x128xf32>
    %80 = vector.shape_cast %79 : vector<2x1x2x128xf32> to vector<2x2x128xf32>
    %c12 = arith.constant 12 : index
    %81 = memref.load %arg3[%c12] : memref<16xf32, #tpu.memory_space<smem>>
    %82 = vector.broadcast %81 : f32 to vector<2x2x128xf32>
    %83 = arith.mulf %80, %82 : vector<2x2x128xf32>
    %84 = vector.extract_strided_slice %0 {offsets = [0, 1, 0, 0], sizes = [2, 1, 2, 128], strides = [1, 1, 1, 1]} : vector<2x4x2x128xf32> to vector<2x1x2x128xf32>
    %85 = vector.shape_cast %84 : vector<2x1x2x128xf32> to vector<2x2x128xf32>
    %c13 = arith.constant 13 : index
    %86 = memref.load %arg3[%c13] : memref<16xf32, #tpu.memory_space<smem>>
    %87 = vector.broadcast %86 : f32 to vector<2x2x128xf32>
    %88 = arith.mulf %85, %87 : vector<2x2x128xf32>
    %89 = arith.addf %83, %88 : vector<2x2x128xf32>
    %90 = vector.extract_strided_slice %0 {offsets = [0, 2, 0, 0], sizes = [2, 1, 2, 128], strides = [1, 1, 1, 1]} : vector<2x4x2x128xf32> to vector<2x1x2x128xf32>
    %91 = vector.shape_cast %90 : vector<2x1x2x128xf32> to vector<2x2x128xf32>
    %c14 = arith.constant 14 : index
    %92 = memref.load %arg3[%c14] : memref<16xf32, #tpu.memory_space<smem>>
    %93 = vector.broadcast %92 : f32 to vector<2x2x128xf32>
    %94 = arith.mulf %91, %93 : vector<2x2x128xf32>
    %95 = arith.addf %89, %94 : vector<2x2x128xf32>
    %96 = vector.extract_strided_slice %0 {offsets = [0, 3, 0, 0], sizes = [2, 1, 2, 128], strides = [1, 1, 1, 1]} : vector<2x4x2x128xf32> to vector<2x1x2x128xf32>
    %97 = vector.shape_cast %96 : vector<2x1x2x128xf32> to vector<2x2x128xf32>
    %c15 = arith.constant 15 : index
    %98 = memref.load %arg3[%c15] : memref<16xf32, #tpu.memory_space<smem>>
    %99 = vector.broadcast %98 : f32 to vector<2x2x128xf32>
    %100 = arith.mulf %97, %99 : vector<2x2x128xf32>
    %101 = arith.addf %95, %100 : vector<2x2x128xf32>
    %c3_7 = arith.constant 3 : index
    %102 = memref.load %arg4[%c3_7] : memref<4xf32, #tpu.memory_space<smem>>
    %103 = vector.broadcast %102 : f32 to vector<2x2x128xf32>
    %104 = arith.addf %101, %103 : vector<2x2x128xf32>
    %105 = vector.shape_cast %26 : vector<2x2x128xf32> to vector<2x1x2x128xf32>
    %106 = vector.shape_cast %52 : vector<2x2x128xf32> to vector<2x1x2x128xf32>
    %107 = vector.shape_cast %78 : vector<2x2x128xf32> to vector<2x1x2x128xf32>
    %108 = vector.shape_cast %104 : vector<2x2x128xf32> to vector<2x1x2x128xf32>
    %109 = tpu.concatenate %105, %106, %107, %108 in 1 : vector<2x1x2x128xf32>, vector<2x1x2x128xf32>, vector<2x1x2x128xf32>, vector<2x1x2x128xf32> -> vector<2x4x2x128xf32>
    %c0_8 = arith.constant 0 : index
    %c0_9 = arith.constant 0 : index
    %c0_10 = arith.constant 0 : index
    %c0_11 = arith.constant 0 : index
    %110 = vector.load %arg5[%c0_8, %c0_9, %c0_10, %c0_11] : memref<2x4x2x128xf32, #tpu.memory_space<vmem>>, vector<2x4x2x128xf32>
    tpu.vector_store %arg5[%c0_8, %c0_9, %c0_10, %c0_11], %109 {strides = array<i32>} : memref<2x4x2x128xf32, #tpu.memory_space<vmem>>, vector<2x4x2x128xf32>,
    return
  }
  func.func @transform_0(%arg0: i32, %arg1: i32) -> (i32, i32, i32, i32) {
    %c0_i32 = arith.constant 0 : i32
    %c0_i32_0 = arith.constant 0 : i32
    %c0_i32_1 = arith.constant 0 : i32
    return %arg0, %c0_i32, %arg1, %c0_i32_0 : i32, i32, i32, i32
  }
  func.func @transform_1(%arg0: i32, %arg1: i32) -> i32 {
    %c0_i32 = arith.constant 0 : i32
    %c0_i32_0 = arith.constant 0 : i32
    return %c0_i32 : i32
  }
  func.func @transform_2(%arg0: i32, %arg1: i32) -> i32 {
    %c0_i32 = arith.constant 0 : i32
    %c0_i32_0 = arith.constant 0 : i32
    return %c0_i32 : i32
  }
  func.func @transform_3(%arg0: i32, %arg1: i32) -> (i32, i32, i32, i32) {
    %c0_i32 = arith.constant 0 : i32
    %c0_i32_0 = arith.constant 0 : i32
    %c0_i32_1 = arith.constant 0 : i32
    return %arg0, %c0_i32, %arg1, %c0_i32_0 : i32, i32, i32, i32
  }
}

</mosaic_0001>

<llo_original>
// kernel: tpu_custom_call.1
$region0: #{tpu_custom_call.1}
  #allocation0 [shape = 'u32[]', space=smem, size = 0x4, offset = 0x4, fixed_abs, tag = 'smem constant byte address 0x4 - core index']
  #allocation1 [shape = 'u32[144,128]{1,0:T(1,128)}', space=vmem, size = 0x12000, scoped, tag = 'internal scratch']
  %s0 = inlined_call_operand.hbm [shape: f32[2,4,2,128], index: 0, kind: input, shape index: {}]
  %s1 = inlined_call_operand.vmem [shape: f32[16], index: 1, kind: input, shape index: {}]
  %s2 = inlined_call_operand.vmem [shape: f32[4], index: 2, kind: input, shape index: {}]
  %s3 = inlined_call_operand.hbm [shape: f32[2,4,2,128], index: 3, kind: output, shape index: {}]
  %s4 = sld [smem:[#allocation0]]
  $region34: #{tpu_custom_call.1} parent=0
    _
  %s6 = ssub.s32 1, %s4
  %s7 = scalar_select 0, %s6, %s4
  $region1: #{tpu_custom_call.1} parent=0
    #allocation2 [shape = 'u8[8192]{0}', space=vmem, size = 0x2000, scoped, tag = 'input window, operand 0, single buffered']
    #allocation3 [shape = 's32[1]{0}', space=sflag, size = 0x4, scoped, tag = 'scoped memory for tpu_custom_call.1']
    #allocation4 [shape = 's32[1]{0}', space=sflag, size = 0x4, scoped, tag = 'scoped memory for tpu_custom_call.1']
    #allocation5 [shape = 's32[1]{0}', space=sflag, size = 0x4, scoped, tag = 'scoped memory for tpu_custom_call.1']
    #allocation6 [shape = 'u8[512]{0}', space=smem, size = 0x200, scoped, tag = 'input window, operand 1, single buffered']
    #allocation7 [shape = 'u8[512]{0}', space=smem, size = 0x200, scoped, tag = 'input window, operand 2, single buffered']
    #allocation8 [shape = 's32[1]{0}', space=sflag, size = 0x4, scoped, tag = 'scoped memory for tpu_custom_call.1']
    #allocation9 [shape = 'u8[8192]{0}', space=vmem, size = 0x2000, scoped, tag = 'output window, operand 0, single buffered']
    %8 = vsyncpa [#allocation3], 0
    %9 = vsyncpa [#allocation5], 0
    %10 = vsyncpa [#allocation8], 0
    %11 = vsyncpa [#allocation4], 0
    // Predicated region
    $region2: #{tpu_custom_call.1} parent=1 // pred_check
      _
    $region3: #{tpu_custom_call.1} parent=1 // pred_check_branch
      %13 = sbr.rel (0) target = $region5
    $region4: #{tpu_custom_call.1} parent=1 // pred_region
      %s15 = ssub.s32 256, 256
      %16 = vsyncadd [#allocation3], %s15
      %s17 = sshll.u32 [#allocation2], 4
      %s18 = int_to_ptr.vmem [resolvable:$true] %s17
      %23 = dma.hbm_to_vmem [thread:$0]  %s0, 256, %s18, [#allocation3], 32, 32, 2
    $region5: #{tpu_custom_call.1} parent=1 // pred_fallthru
      _
    // Predicated region
    $region6: #{tpu_custom_call.1} parent=1 // pred_check
      _
    $region7: #{tpu_custom_call.1} parent=1 // pred_check_branch
      %25 = sbr.rel (0) target = $region9
    $region8: #{tpu_custom_call.1} parent=1 // pred_region
      %s27 = ssub.s32 16, 16
      %28 = vsyncadd [#allocation5], %s27
      %s30 = sshll.u32 %s1, 4
      %s31 = int_to_ptr.vmem [resolvable:$true] %s30
      %33 = dma.vmem_to_smem %s31, 16, [#allocation6], [#allocation5]
    $region9: #{tpu_custom_call.1} parent=1 // pred_fallthru
      _
    // Predicated region
    $region10: #{tpu_custom_call.1} parent=1 // pred_check
      _
    $region11: #{tpu_custom_call.1} parent=1 // pred_check_branch
      %35 = sbr.rel (0) target = $region13
    $region12: #{tpu_custom_call.1} parent=1 // pred_region
      %s37 = ssub.s32 16, 16
      %38 = vsyncadd [#allocation8], %s37
      %s40 = sshll.u32 %s2, 4
      %s41 = int_to_ptr.vmem [resolvable:$true] %s40
      %43 = dma.vmem_to_smem %s41, 16, [#allocation7], [#allocation8]
    $region13: #{tpu_custom_call.1} parent=1 // pred_fallthru
      _
    // Predicated region
    $region14: #{tpu_custom_call.1} parent=1 // pred_check
      _
    $region15: #{tpu_custom_call.1} parent=1 // pred_check_branch
      %45 = sbr.rel (0) target = $region17
    $region16: #{tpu_custom_call.1} parent=1 // pred_region
      %46 = dma.done [#allocation3], 256
    $region17: #{tpu_custom_call.1} parent=1 // pred_fallthru
      _
    // Predicated region
    $region18: #{tpu_custom_call.1} parent=1 // pred_check
      _
    $region19: #{tpu_custom_call.1} parent=1 // pred_check_branch
      %48 = sbr.rel (0) target = $region21
    $region20: #{tpu_custom_call.1} parent=1 // pred_region
      %49 = dma.done [#allocation5], 16
    $region21: #{tpu_custom_call.1} parent=1 // pred_fallthru
      _
    // Predicated region
    $region22: #{tpu_custom_call.1} parent=1 // pred_check
      _
    $region23: #{tpu_custom_call.1} parent=1 // pred_check_branch
      %51 = sbr.rel (0) target = $region25
    $region24: #{tpu_custom_call.1} parent=1 // pred_region
      %52 = dma.done [#allocation8], 16
    $region25: #{tpu_custom_call.1} parent=1 // pred_fallthru
      _
    %53 = sfence
    %v54 = vld [vmem:[#allocation2] sm:$0x3]
    %v55 = vld [vmem:[#allocation2 + $0x2] sm:$0x3]
    %v56 = vld [vmem:[#allocation2 + $0x4] sm:$0x3]
    %v57 = vld [vmem:[#allocation2 + $0x6] sm:$0x3]
    %v58 = vld [vmem:[#allocation2 + $0x8] sm:$0x3]
    %v59 = vld [vmem:[#allocation2 + $0xa] sm:$0x3]
    %v60 = vld [vmem:[#allocation2 + $0xc] sm:$0x3]
    %v61 = vld [vmem:[#allocation2 + $0xe] sm:$0x3]
    %s62 = sld [smem:[#allocation6]]
    %v63 = vstv %s62
    %v64 = vmul.f32 %v54, %v63
    %v65 = vmul.f32 %v58, %v63
    %s66 = sld [smem:[#allocation6 + $0x1]]
    %v67 = vstv %s66
    %v68 = vmul.f32 %v55, %v67
    %v69 = vmul.f32 %v59, %v67
    %v70 = vadd.f32 %v64, %v68
    %v71 = vadd.f32 %v65, %v69
    %s72 = sld [smem:[#allocation6 + $0x2]]
    %v73 = vstv %s72
    %v74 = vmul.f32 %v56, %v73
    %v75 = vmul.f32 %v60, %v73
    %v76 = vadd.f32 %v70, %v74
    %v77 = vadd.f32 %v71, %v75
    %s78 = sld [smem:[#allocation6 + $0x3]]
    %v79 = vstv %s78
    %v80 = vmul.f32 %v57, %v79
    %v81 = vmul.f32 %v61, %v79
    %v82 = vadd.f32 %v76, %v80
    %v83 = vadd.f32 %v77, %v81
    %s84 = sld [smem:[#allocation7]]
    %v85 = vstv %s84
    %v86 = vadd.f32 %v82, %v85
    %v87 = vadd.f32 %v83, %v85
    %s88 = sld [smem:[#allocation6 + $0x4]]
    %v89 = vstv %s88
    %v90 = vmul.f32 %v54, %v89
    %v91 = vmul.f32 %v58, %v89
    %s92 = sld [smem:[#allocation6 + $0x5]]
    %v93 = vstv %s92
    %v94 = vmul.f32 %v55, %v93
    %v95 = vmul.f32 %v59, %v93
    %v96 = vadd.f32 %v90, %v94
    %v97 = vadd.f32 %v91, %v95
    %s98 = sld [smem:[#allocation6 + $0x6]]
    %v99 = vstv %s98
    %v100 = vmul.f32 %v56, %v99
    %v101 = vmul.f32 %v60, %v99
    %v102 = vadd.f32 %v96, %v100
    %v103 = vadd.f32 %v97, %v101
    %s104 = sld [smem:[#allocation6 + $0x7]]
    %v105 = vstv %s104
    %v106 = vmul.f32 %v57, %v105
    %v107 = vmul.f32 %v61, %v105
    %v108 = vadd.f32 %v102, %v106
    %v109 = vadd.f32 %v103, %v107
    %s110 = sld [smem:[#allocation7 + $0x1]]
    %v111 = vstv %s110
    %v112 = vadd.f32 %v108, %v111
    %v113 = vadd.f32 %v109, %v111
    %s114 = sld [smem:[#allocation6 + $0x8]]
    %v115 = vstv %s114
    %v116 = vmul.f32 %v54, %v115
    %v117 = vmul.f32 %v58, %v115
    %s118 = sld [smem:[#allocation6 + $0x9]]
    %v119 = vstv %s118
    %v120 = vmul.f32 %v55, %v119
    %v121 = vmul.f32 %v59, %v119
    %v122 = vadd.f32 %v116, %v120
    %v123 = vadd.f32 %v117, %v121
    %s124 = sld [smem:[#allocation6 + $0xa]]
    %v125 = vstv %s124
    %v126 = vmul.f32 %v56, %v125
    %v127 = vmul.f32 %v60, %v125
    %v128 = vadd.f32 %v122, %v126
    %v129 = vadd.f32 %v123, %v127
    %s130 = sld [smem:[#allocation6 + $0xb]]
    %v131 = vstv %s130
    %v132 = vmul.f32 %v57, %v131
    %v133 = vmul.f32 %v61, %v131
    %v134 = vadd.f32 %v128, %v132
    %v135 = vadd.f32 %v129, %v133
    %s136 = sld [smem:[#allocation7 + $0x2]]
    %v137 = vstv %s136
    %v138 = vadd.f32 %v134, %v137
    %v139 = vadd.f32 %v135, %v137
    %s140 = sld [smem:[#allocation6 + $0xc]]
    %v141 = vstv %s140
    %v142 = vmul.f32 %v54, %v141
    %v143 = vmul.f32 %v58, %v141
    %s144 = sld [smem:[#allocation6 + $0xd]]
    %v145 = vstv %s144
    %v146 = vmul.f32 %v55, %v145
    %v147 = vmul.f32 %v59, %v145
    %v148 = vadd.f32 %v142, %v146
    %v149 = vadd.f32 %v143, %v147
    %s150 = sld [smem:[#allocation6 + $0xe]]
    %v151 = vstv %s150
    %v152 = vmul.f32 %v56, %v151
    %v153 = vmul.f32 %v60, %v151
    %v154 = vadd.f32 %v148, %v152
    %v155 = vadd.f32 %v149, %v153
    %s156 = sld [smem:[#allocation6 + $0xf]]
    %v157 = vstv %s156
    %v158 = vmul.f32 %v57, %v157
    %v159 = vmul.f32 %v61, %v157
    %v160 = vadd.f32 %v154, %v158
    %v161 = vadd.f32 %v155, %v159
    %s162 = sld [smem:[#allocation7 + $0x3]]
    %v163 = vstv %s162
    %v164 = vadd.f32 %v160, %v163
    %v165 = vadd.f32 %v161, %v163
    %166 = vst [vmem:[#allocation9] sm:$0x3] %v86
    %167 = vst [vmem:[#allocation9 + $0x2] sm:$0x3] %v112
    %168 = vst [vmem:[#allocation9 + $0x4] sm:$0x3] %v138
    %169 = vst [vmem:[#allocation9 + $0x6] sm:$0x3] %v164
    %170 = vst [vmem:[#allocation9 + $0x8] sm:$0x3] %v87
    %171 = vst [vmem:[#allocation9 + $0xa] sm:$0x3] %v113
    %172 = vst [vmem:[#allocation9 + $0xc] sm:$0x3] %v139
    %173 = vst [vmem:[#allocation9 + $0xe] sm:$0x3] %v165
    // Predicated region
    $region26: #{tpu_custom_call.1} parent=1 // pred_check
      _
    $region27: #{tpu_custom_call.1} parent=1 // pred_check_branch
      %175 = sbr.rel (0) target = $region29
    $region28: #{tpu_custom_call.1} parent=1 // pred_region
      %s177 = ssub.s32 256, 256
      %178 = vsyncadd [#allocation4], %s177
      %s179 = sshll.u32 [#allocation9], 4
      %s180 = int_to_ptr.vmem [resolvable:$true] %s179
      %185 = dma.vmem_to_hbm [thread:$0]  %s180, 256, %s3, [#allocation4], 32, 32, 2
    $region29: #{tpu_custom_call.1} parent=1 // pred_fallthru
      _
    // Predicated region
    $region30: #{tpu_custom_call.1} parent=1 // pred_check
      _
    $region31: #{tpu_custom_call.1} parent=1 // pred_check_branch
      %187 = sbr.rel (0) target = $region33
    $region32: #{tpu_custom_call.1} parent=1 // pred_region
      %188 = dma.done [#allocation4], 256
    $region33: #{tpu_custom_call.1} parent=1 // pred_fallthru
      _
    %189 = vsyncpa [#allocation3], 1
    %190 = vsyncpa [#allocation4], 1
    %191 = vsyncpa [#allocation5], 1
    %192 = vsyncpa [#allocation8], 1

</llo_original>
